<compile_context>
chip_gen: v7x
topology: tpu7x:2x2x1
jax: 0.10.0
libtpu: 0.0.40
codegen_flags: <defaults>
</compile_context>

<pallas_src>
import functools

import jax
import jax.numpy as jnp
from jax.experimental import pallas as pl
from jax.experimental.pallas import tpu as pltpu

NEG_SLOPE = 0.01   # nn.LeakyReLU default negative_slope
BN_EPS = 1e-5      # nn.BatchNorm2d default eps


def _round_up(x, m):
    return (x + m - 1) // m * m


def _pad_k(k):
    """Padded K (contraction) dim: single block up to 2048, else 512-wide blocks."""
    kp = _round_up(k, 128)
    return kp if kp <= 2048 else _round_up(kp, 512)


def _tile_k(kp):
    return kp if kp <= 2048 else 512


def _pad_n(n):
    """Padded N (output-channel) dim: single block up to 256, else 256-wide blocks."""
    np_ = _round_up(n, 128)
    return np_ if np_ <= 256 else _round_up(np_, 256)


def _tile_n(np_):
    return np_ if np_ <= 256 else 256


# ----------------------------------------------------------------------------
# Pallas kernel: tiled GEMM + bias, with optional fully-fused BatchNorm (batch
# statistics computed from the f32 accumulator) and LeakyReLU epilogue.
# ----------------------------------------------------------------------------
def _conv_gemm_kernel(*refs, fuse_bn, apply_act, multi_k, m_valid, tm,
                      neg_slope, eps):
    it = iter(refs)
    a_ref, b_ref, bias_ref = next(it), next(it), next(it)
    gamma_ref = beta_ref = None
    if fuse_bn:
        gamma_ref, beta_ref = next(it), next(it)
    o_ref = next(it)
    acc_ref = next(it) if multi_k else None

    def epilogue(acc):
        out = acc + bias_ref[...]                         # f32 (tm, tn) + (1, tn)
        if fuse_bn:
            # fuse_bn implies a single M block (grid i == 0), so per-channel batch
            # statistics are complete right here in the accumulator.
            if m_valid != tm:
                row = jax.lax.broadcasted_iota(jnp.int32, out.shape, 0)
                masked = jnp.where(row < m_valid, out, 0.0)
            else:
                masked = out
            col_sum = jnp.sum(masked, axis=0, keepdims=True)
            col_sq = jnp.sum(masked * masked, axis=0, keepdims=True)
            mean = col_sum * (1.0 / m_valid)
            var = jnp.maximum(col_sq * (1.0 / m_valid) - mean * mean, 0.0)
            scale = jax.lax.rsqrt(var + eps) * gamma_ref[...]
            out = (out - mean) * scale + beta_ref[...]
        if apply_act:
            out = jnp.where(out >= 0.0, out, neg_slope * out)
        o_ref[...] = out.astype(o_ref.dtype)

    if multi_k:
        k = pl.program_id(2)

        @pl.when(k == 0)
        def _():
            acc_ref[...] = jnp.zeros_like(acc_ref)

        acc_ref[...] += jnp.dot(a_ref[...], b_ref[...],
                                preferred_element_type=jnp.float32)

        @pl.when(k == pl.num_programs(2) - 1)
        def _():
            epilogue(acc_ref[...])
    else:
        # K fits in one block: no VMEM accumulator round-trip, no pl.when phases.
        epilogue(jnp.dot(a_ref[...], b_ref[...],
                         preferred_element_type=jnp.float32))


def fused_conv_gemm(a, w_p, bias_p, gamma_p, beta_p, n_out, *, use_bn,
                    neg_slope=NEG_SLOPE, eps=BN_EPS):
    """LeakyReLU(BN?(a @ w + bias)).

    a:      (M, K) im2col patches (cast to bf16 here).
    w_p:    (Kp, Np) weights, pre-padded & pre-cast to bf16 at pack time.
    bias_p, gamma_p, beta_p: (1, Np) f32, pre-padded at pack time.
    Returns (M, n_out) f32.
    """
    M, K = a.shape
    Kp, Np = w_p.shape

    if M <= 2048:
        Mp = _round_up(M, 8)
        tm = Mp                               # single row block == full dim
    else:
        tm = 512
        Mp = _round_up(M, tm)
    tk, tn = _tile_k(Kp), _tile_n(Np)
    gi, gj, gk = Mp // tm, Np // tn, Kp // tk
    multi_k = gk > 1

    fuse_bn = use_bn and gi == 1              # batch stats complete per N block
    apply_act = fuse_bn or not use_bn         # otherwise act applied with BN in glue

    a_p = a.astype(jnp.bfloat16)
    if (Mp, Kp) != (M, K):
        a_p = jnp.pad(a_p, ((0, Mp - M), (0, Kp - K)))

    if multi_k:
        grid = (gi, gj, gk)
        a_spec = pl.BlockSpec((tm, tk), lambda i, j, k: (i, k))
        b_spec = pl.BlockSpec((tk, tn), lambda i, j, k: (k, j))
        vec_spec = pl.BlockSpec((1, tn), lambda i, j, k: (0, j))
        o_spec = pl.BlockSpec((tm, tn), lambda i, j, k: (i, j))
        dims = ("parallel", "parallel", "arbitrary")
        scratch = [pltpu.VMEM((tm, tn), jnp.float32)]
    else:
        grid = (gi, gj)
        a_spec = pl.BlockSpec((tm, tk), lambda i, j: (i, 0))
        b_spec = pl.BlockSpec((tk, tn), lambda i, j: (0, j))
        vec_spec = pl.BlockSpec((1, tn), lambda i, j: (0, j))
        o_spec = pl.BlockSpec((tm, tn), lambda i, j: (i, j))
        dims = ("parallel", "parallel")
        scratch = []

    in_specs = [a_spec, b_spec, vec_spec]
    operands = [a_p, w_p, bias_p]
    if fuse_bn:
        in_specs += [vec_spec, vec_spec]
        operands += [gamma_p, beta_p]

    kernel = functools.partial(
        _conv_gemm_kernel, fuse_bn=fuse_bn, apply_act=apply_act,
        multi_k=multi_k, m_valid=M, tm=tm, neg_slope=neg_slope, eps=eps)

    outs = pl.pallas_call(
        kernel,
        out_shape=(jax.ShapeDtypeStruct((Mp, Np), jnp.float32),),
        grid_spec=pltpu.PrefetchScalarGridSpec(
            num_scalar_prefetch=0,
            grid=grid,
            in_specs=in_specs,
            out_specs=(o_spec,),
            scratch_shapes=scratch),
        compiler_params=pltpu.CompilerParams(dimension_semantics=dims),
    )(*operands)
    if not isinstance(outs, (tuple, list)):
        outs = (outs,)

    y = outs[0][:M, :n_out]
    if fuse_bn or not use_bn:
        return y

    # Fallback (M too large for one row block): batch stats + BN + LeakyReLU in glue.
    # TODO(synk): for very large M, emit per-block partial sums from the kernel and
    # fuse this scale/shift + LeakyReLU into a second Pallas elementwise pass.
    mean = jnp.mean(y, axis=0)
    var = jnp.mean(jnp.square(y - mean), axis=0)
    scale = jax.lax.rsqrt(var + eps) * gamma_p[0, :n_out]
    y = (y - mean) * scale + beta_p[0, :n_out]
    return jnp.where(y >= 0.0, y, neg_slope * y)


# ----------------------------------------------------------------------------
# Module glue: im2col + layout transposes (XLA), parameter packing (once, at init)
# ----------------------------------------------------------------------------
def _im2col(x, kh, kw, stride, pad):
    """x: NHWC -> (N*Ho*Wo, kh*kw*C) patch matrix, feature order (KH, KW, C)."""
    # TODO(synk): for large images, fuse the overlapping-window patch extraction
    # into the GEMM kernel via manual DMA; at these sizes one fused bf16 patch
    # materialization in XLA is cheap.
    n, h, w, c = x.shape
    xp = jnp.pad(x, ((0, 0), (pad, pad), (pad, pad), (0, 0))) if pad else x
    ho = (h + 2 * pad - kh) // stride + 1
    wo = (w + 2 * pad - kw) // stride + 1
    cols = []
    for ki in range(kh):
        for kj in range(kw):
            cols.append(xp[:, ki:ki + stride * ho:stride,
                           kj:kj + stride * wo:stride, :])
    patches = jnp.stack(cols, axis=3)            # (N, Ho, Wo, kh*kw, C)
    return patches.reshape(n * ho * wo, kh * kw * c), (n, ho, wo)


def pack_conv_params(w_oihw, bias, gamma=None, beta=None):
    """Flatten/pad/cast the conv weight + per-channel vectors once, off the hot path."""
    cout, cin, kh, kw = w_oihw.shape
    k = kh * kw * cin
    kp, np_ = _pad_k(k), _pad_n(cout)
    w2 = jnp.transpose(w_oihw, (2, 3, 1, 0)).reshape(k, cout)   # (KH,KW,Cin) major
    w_p = jnp.zeros((kp, np_), jnp.bfloat16).at[:k, :cout].set(
        w2.astype(jnp.bfloat16))

    def vec(v):
        return jnp.zeros((1, np_), jnp.float32).at[0, :cout].set(
            v.astype(jnp.float32))

    return {
        "w": w_p,
        "bias": vec(bias),
        "gamma": vec(gamma) if gamma is not None else None,
        "beta": vec(beta) if beta is not None else None,
    }


@functools.partial(jax.jit, static_argnames=("cfg",))
def conv2d_module_forward(x_nchw, params, cfg):
    """Forward of the Conv2d wrapper: conv -> (BatchNorm2d | Identity) -> LeakyReLU.

    cfg = (kh, kw, cout, stride, padding, use_bn) — static.
    x_nchw: (N, Cin, H, W) float32 (PyTorch layout); returns (N, Cout, Ho, Wo) f32.
    """
    kh, kw, cout, stride, padding, use_bn = cfg
    x = jnp.transpose(x_nchw, (0, 2, 3, 1)).astype(jnp.bfloat16)   # NCHW -> NHWC
    a, (n, ho, wo) = _im2col(x, kh, kw, stride, padding)
    y = fused_conv_gemm(a, params["w"], params["bias"],
                        params["gamma"], params["beta"], cout, use_bn=use_bn)
    y = y.reshape(n, ho, wo, cout)
    return jnp.transpose(y, (0, 3, 1, 2))                          # NHWC -> NCHW


# ----------------------------------------------------------------------------
# Pure-JAX reference (same bf16 operand rounding) for self-check
# ----------------------------------------------------------------------------
def _reference_forward(x, w, b, gamma, beta, stride, padding, use_bn):
    xf = x.astype(jnp.bfloat16).astype(jnp.float32)
    wf = w.astype(jnp.bfloat16).astype(jnp.float32)
    y = jax.lax.conv_general_dilated(
        xf, wf, window_strides=(stride, stride),
        padding=[(padding, padding), (padding, padding)],
        dimension_numbers=("NCHW", "OIHW", "NCHW"))
    y = y + b.reshape(1, -1, 1, 1)
    if use_bn:
        mean = jnp.mean(y, axis=(0, 2, 3), keepdims=True)
        var = jnp.mean(jnp.square(y - mean), axis=(0, 2, 3), keepdims=True)
        y = (y - mean) * jax.lax.rsqrt(var + BN_EPS)
        y = y * gamma.reshape(1, -1, 1, 1) + beta.reshape(1, -1, 1, 1)
    return jnp.where(y >= 0.0, y, NEG_SLOPE * y)


if __name__ == "__main__":
    key = jax.random.PRNGKey(0)
    kx, kw1, kb1, kg1, kbe1, kw2, kb2 = jax.random.split(key, 7)

    # Input: batch=2, channels=4, spatial=16x16 (NCHW, like PyTorch).
    x = jax.random.normal(kx, (2, 4, 16, 16), jnp.float32)

    # Layer A: Conv2d(4->16, k=3, s=1, p=1) + BatchNorm2d + LeakyReLU.
    cin, cout_a = 4, 16
    bound = 1.0 / (cin * 9.0) ** 0.5
    w_a = jax.random.uniform(kw1, (cout_a, cin, 3, 3), jnp.float32, -bound, bound)
    b_a = jax.random.uniform(kb1, (cout_a,), jnp.float32, -bound, bound)
    gamma_a = 1.0 + 0.1 * jax.random.normal(kg1, (cout_a,), jnp.float32)
    beta_a = 0.1 * jax.random.normal(kbe1, (cout_a,), jnp.float32)
    params_a = pack_conv_params(w_a, b_a, gamma_a, beta_a)
    out_a = conv2d_module_forward(x, params_a, cfg=(3, 3, cout_a, 1, 1, True))

    # Layer B: Conv2d(4->8, k=3, s=2, p=1) + Identity + LeakyReLU.
    cout_b = 8
    w_b = jax.random.uniform(kw2, (cout_b, cin, 3, 3), jnp.float32, -bound, bound)
    b_b = jax.random.uniform(kb2, (cout_b,), jnp.float32, -bound, bound)
    params_b = pack_conv_params(w_b, b_b)
    out_b = conv2d_module_forward(x, params_b, cfg=(3, 3, cout_b, 2, 1, False))

    out_a, out_b = jax.block_until_ready((out_a, out_b))
    assert out_a.shape == (2, 16, 16, 16), out_a.shape
    assert out_b.shape == (2, 8, 8, 8), out_b.shape

    ref_a = _reference_forward(x, w_a, b_a, gamma_a, beta_a, 1, 1, True)
    ref_b = _reference_forward(x, w_b, b_b, None, None, 2, 1, False)
    assert jnp.allclose(out_a, ref_a, atol=2e-2, rtol=2e-2), float(
        jnp.max(jnp.abs(out_a - ref_a)))
    assert jnp.allclose(out_b, ref_b, atol=2e-2, rtol=2e-2), float(
        jnp.max(jnp.abs(out_b - ref_b)))

    print("KERNEL_OK")
</pallas_src>

<mosaic_0001>
module attributes {stable_mosaic.version = 11 : i64} {
  func.func @_conv_gemm_kernel(%arg0: i32, %arg1: i32, %arg2: memref<512x128xbf16, #tpu.memory_space<vmem>>, %arg3: memref<128x128xbf16, #tpu.memory_space<vmem>>, %arg4: memref<1x128xf32, #tpu.memory_space<vmem>>, %arg5: memref<1x128xf32, #tpu.memory_space<vmem>>, %arg6: memref<1x128xf32, #tpu.memory_space<vmem>>, %arg7: memref<512x128xf32, #tpu.memory_space<vmem>>) attributes {dimension_semantics = [#tpu.dimension_semantics<parallel>, #tpu.dimension_semantics<parallel>], iteration_bounds = array<i64: 1, 1>, scalar_prefetch = 0 : i64, scratch_operands = 0 : i64, tpu.core_type = #tpu.core_type<tc>, window_params = [{transform_indices = @transform_0, window_bounds = array<i64: 512, 128>}, {transform_indices = @transform_1, window_bounds = array<i64: 128, 128>}, {transform_indices = @transform_2, window_bounds = array<i64: 1, 128>}, {transform_indices = @transform_3, window_bounds = array<i64: 1, 128>}, {transform_indices = @transform_4, window_bounds = array<i64: 1, 128>}, {transform_indices = @transform_5, window_bounds = array<i64: 512, 128>}]} {
    %c0 = arith.constant 0 : index
    %c0_0 = arith.constant 0 : index
    %0 = vector.load %arg2[%c0, %c0_0] : memref<512x128xbf16, #tpu.memory_space<vmem>>, vector<512x128xbf16>
    %c0_1 = arith.constant 0 : index
    %c0_2 = arith.constant 0 : index
    %1 = vector.load %arg3[%c0_1, %c0_2] : memref<128x128xbf16, #tpu.memory_space<vmem>>, vector<128x128xbf16>
    %cst = arith.constant dense<0.000000e+00> : vector<512x128xf32>
    %2 = tpu.matmul %0, %1, %cst {dimension_numbers = #tpu.dot_dimension_numbers<[1], [0], [0], [1], [0, 0, 1, 1], [], []>} : vector<512x128xbf16>, vector<128x128xbf16>, vector<512x128xf32> -> vector<512x128xf32>
    %c0_3 = arith.constant 0 : index
    %c0_4 = arith.constant 0 : index
    %3 = vector.load %arg4[%c0_3, %c0_4] : memref<1x128xf32, #tpu.memory_space<vmem>>, vector<1x128xf32>
    %4 = vector.broadcast %3 : vector<1x128xf32> to vector<512x128xf32>
    %5 = arith.addf %2, %4 : vector<512x128xf32>
    %cst_5 = arith.constant dense<0.000000e+00> : vector<128xf32>
    %6 = vector.multi_reduction <add>, %5, %cst_5 [0] : vector<512x128xf32> to vector<128xf32>
    %7 = vector.shape_cast %6 : vector<128xf32> to vector<1x128xf32>
    %8 = arith.mulf %5, %5 : vector<512x128xf32>
    %cst_6 = arith.constant dense<0.000000e+00> : vector<128xf32>
    %9 = vector.multi_reduction <add>, %8, %cst_6 [0] : vector<512x128xf32> to vector<128xf32>
    %10 = vector.shape_cast %9 : vector<128xf32> to vector<1x128xf32>
    %cst_7 = arith.constant 0.001953125 : f32
    %11 = vector.broadcast %cst_7 : f32 to vector<1x128xf32>
    %12 = arith.mulf %7, %11 : vector<1x128xf32>
    %cst_8 = arith.constant 0.001953125 : f32
    %13 = vector.broadcast %cst_8 : f32 to vector<1x128xf32>
    %14 = arith.mulf %10, %13 : vector<1x128xf32>
    %15 = arith.mulf %12, %12 : vector<1x128xf32>
    %16 = arith.subf %14, %15 : vector<1x128xf32>
    %cst_9 = arith.constant 0.000000e+00 : f32
    %17 = vector.broadcast %cst_9 : f32 to vector<1x128xf32>
    %18 = arith.maximumf %16, %17 : vector<1x128xf32>
    %cst_10 = arith.constant 9.99999974E-6 : f32
    %19 = vector.broadcast %cst_10 : f32 to vector<1x128xf32>
    %20 = arith.addf %18, %19 : vector<1x128xf32>
    %21 = math.rsqrt %20 : vector<1x128xf32>
    %c0_11 = arith.constant 0 : index
    %c0_12 = arith.constant 0 : index
    %22 = vector.load %arg5[%c0_11, %c0_12] : memref<1x128xf32, #tpu.memory_space<vmem>>, vector<1x128xf32>
    %23 = arith.mulf %21, %22 : vector<1x128xf32>
    %24 = vector.broadcast %12 : vector<1x128xf32> to vector<512x128xf32>
    %25 = arith.subf %5, %24 : vector<512x128xf32>
    %26 = vector.broadcast %23 : vector<1x128xf32> to vector<512x128xf32>
    %27 = arith.mulf %25, %26 : vector<512x128xf32>
    %c0_13 = arith.constant 0 : index
    %c0_14 = arith.constant 0 : index
    %28 = vector.load %arg6[%c0_13, %c0_14] : memref<1x128xf32, #tpu.memory_space<vmem>>, vector<1x128xf32>
    %29 = vector.broadcast %28 : vector<1x128xf32> to vector<512x128xf32>
    %30 = arith.addf %27, %29 : vector<512x128xf32>
    %cst_15 = arith.constant 0.000000e+00 : f32
    %31 = vector.broadcast %cst_15 : f32 to vector<512x128xf32>
    %32 = arith.cmpf oge, %30, %31 : vector<512x128xf32>
    %cst_16 = arith.constant 0.00999999977 : f32
    %33 = vector.broadcast %cst_16 : f32 to vector<512x128xf32>
    %34 = arith.mulf %33, %30 : vector<512x128xf32>
    %35 = arith.select %32, %30, %34 : vector<512x128xi1>, vector<512x128xf32>
    %c0_17 = arith.constant 0 : index
    %c0_18 = arith.constant 0 : index
    %36 = vector.load %arg7[%c0_17, %c0_18] : memref<512x128xf32, #tpu.memory_space<vmem>>, vector<512x128xf32>
    tpu.vector_store %arg7[%c0_17, %c0_18], %35 {strides = array<i32>} : memref<512x128xf32, #tpu.memory_space<vmem>>, vector<512x128xf32>,
    return
  }
  func.func @transform_0(%arg0: i32, %arg1: i32) -> (i32, i32) {
    %c0_i32 = arith.constant 0 : i32
    %c0_i32_0 = arith.constant 0 : i32
    return %arg0, %c0_i32 : i32, i32
  }
  func.func @transform_1(%arg0: i32, %arg1: i32) -> (i32, i32) {
    %c0_i32 = arith.constant 0 : i32
    %c0_i32_0 = arith.constant 0 : i32
    return %c0_i32, %arg1 : i32, i32
  }
  func.func @transform_2(%arg0: i32, %arg1: i32) -> (i32, i32) {
    %c0_i32 = arith.constant 0 : i32
    %c0_i32_0 = arith.constant 0 : i32
    return %c0_i32, %arg1 : i32, i32
  }
  func.func @transform_3(%arg0: i32, %arg1: i32) -> (i32, i32) {
    %c0_i32 = arith.constant 0 : i32
    %c0_i32_0 = arith.constant 0 : i32
    return %c0_i32, %arg1 : i32, i32
  }
  func.func @transform_4(%arg0: i32, %arg1: i32) -> (i32, i32) {
    %c0_i32 = arith.constant 0 : i32
    %c0_i32_0 = arith.constant 0 : i32
    return %c0_i32, %arg1 : i32, i32
  }
  func.func @transform_5(%arg0: i32, %arg1: i32) -> (i32, i32) {
    %c0_i32 = arith.constant 0 : i32
    return %arg0, %arg1 : i32, i32
  }
}

</mosaic_0001>

<llo_original>
// kernel: conv2d_module_forward.1
$region0: #{conv2d_module_forward.1}
  #allocation0 [shape = 'u32[]', space=smem, size = 0x4, offset = 0x4, fixed_abs, tag = 'smem constant byte address 0x4 - core index']
  #allocation1 [shape = 'u32[144,128]{1,0:T(1,128)}', space=vmem, size = 0x12000, scoped, tag = 'internal scratch']
  %s0 = inlined_call_operand.vmem [shape: bf16[512,128], index: 0, kind: input, shape index: {}]
  %s1 = inlined_call_operand.vmem [shape: bf16[128,128], index: 1, kind: input, shape index: {}]
  %s2 = inlined_call_operand.vmem [shape: f32[1,128], index: 2, kind: input, shape index: {}]
  %s3 = inlined_call_operand.vmem [shape: f32[1,128], index: 3, kind: input, shape index: {}]
  %s4 = inlined_call_operand.vmem [shape: f32[1,128], index: 4, kind: input, shape index: {}]
  %s5 = inlined_call_operand.vmem [shape: f32[512,128], index: 5, kind: output, shape index: {}]
  %s6 = sld [smem:[#allocation0]]
  $region30: #{conv2d_module_forward.1} parent=0
    _
  %s8 = ssub.s32 1, %s6
  %s9 = scalar_select 0, %s8, %s6
  // Predicated region
  $region2: #{conv2d_module_forward.1} parent=0 // pred_check
    _
  $region3: #{conv2d_module_forward.1} parent=0 // pred_check_branch
    %11 = sbr.rel (0) target = $region5
  $region4: #{conv2d_module_forward.1} parent=0 // pred_region
    _
  $region5: #{conv2d_module_forward.1} parent=0 // pred_fallthru
    _
  // Predicated region
  $region6: #{conv2d_module_forward.1} parent=0 // pred_check
    _
  $region7: #{conv2d_module_forward.1} parent=0 // pred_check_branch
    %13 = sbr.rel (0) target = $region9
  $region8: #{conv2d_module_forward.1} parent=0 // pred_region
    _
  $region9: #{conv2d_module_forward.1} parent=0 // pred_fallthru
    _
  // Predicated region
  $region10: #{conv2d_module_forward.1} parent=0 // pred_check
    _
  $region11: #{conv2d_module_forward.1} parent=0 // pred_check_branch
    %15 = sbr.rel (0) target = $region13
  $region12: #{conv2d_module_forward.1} parent=0 // pred_region
    _
  $region13: #{conv2d_module_forward.1} parent=0 // pred_fallthru
    _
  // Predicated region
  $region14: #{conv2d_module_forward.1} parent=0 // pred_check
    _
  $region15: #{conv2d_module_forward.1} parent=0 // pred_check_branch
    %17 = sbr.rel (0) target = $region17
  $region16: #{conv2d_module_forward.1} parent=0 // pred_region
    _
  $region17: #{conv2d_module_forward.1} parent=0 // pred_fallthru
    _
  // Predicated region
  $region18: #{conv2d_module_forward.1} parent=0 // pred_check
    _
  $region19: #{conv2d_module_forward.1} parent=0 // pred_check_branch
    %19 = sbr.rel (0) target = $region21
  $region20: #{conv2d_module_forward.1} parent=0 // pred_region
    _
  $region21: #{conv2d_module_forward.1} parent=0 // pred_fallthru
    _
  %v21 = vld [vmem:[%s0] sm:$0xf]
  %v22 = vld [vmem:[%s0 + $0x4] sm:$0xf]
  %v23 = vld [vmem:[%s0 + $0x8] sm:$0xf]
  %v24 = vld [vmem:[%s0 + $0xc] sm:$0xf]
  %v25 = vld [vmem:[%s0 + $0x10] sm:$0xf]
  %v26 = vld [vmem:[%s0 + $0x14] sm:$0xf]
  %v27 = vld [vmem:[%s0 + $0x18] sm:$0xf]
  %v28 = vld [vmem:[%s0 + $0x1c] sm:$0xf]
  %v29 = vld [vmem:[%s0 + $0x20] sm:$0xf]
  %v30 = vld [vmem:[%s0 + $0x24] sm:$0xf]
  %v31 = vld [vmem:[%s0 + $0x28] sm:$0xf]
  %v32 = vld [vmem:[%s0 + $0x2c] sm:$0xf]
  %v33 = vld [vmem:[%s0 + $0x30] sm:$0xf]
  %v34 = vld [vmem:[%s0 + $0x34] sm:$0xf]
  %v35 = vld [vmem:[%s0 + $0x38] sm:$0xf]
  %v36 = vld [vmem:[%s0 + $0x3c] sm:$0xf]
  %v37 = vld [vmem:[%s0 + $0x40] sm:$0xf]
  %v38 = vld [vmem:[%s0 + $0x44] sm:$0xf]
  %v39 = vld [vmem:[%s0 + $0x48] sm:$0xf]
  %v40 = vld [vmem:[%s0 + $0x4c] sm:$0xf]
  %v41 = vld [vmem:[%s0 + $0x50] sm:$0xf]
  %v42 = vld [vmem:[%s0 + $0x54] sm:$0xf]
  %v43 = vld [vmem:[%s0 + $0x58] sm:$0xf]
  %v44 = vld [vmem:[%s0 + $0x5c] sm:$0xf]
  %v45 = vld [vmem:[%s0 + $0x60] sm:$0xf]
  %v46 = vld [vmem:[%s0 + $0x64] sm:$0xf]
  %v47 = vld [vmem:[%s0 + $0x68] sm:$0xf]
  %v48 = vld [vmem:[%s0 + $0x6c] sm:$0xf]
  %v49 = vld [vmem:[%s0 + $0x70] sm:$0xf]
  %v50 = vld [vmem:[%s0 + $0x74] sm:$0xf]
  %v51 = vld [vmem:[%s0 + $0x78] sm:$0xf]
  %v52 = vld [vmem:[%s0 + $0x7c] sm:$0xf]
  %v53 = vld [vmem:[%s0 + $0x80] sm:$0xf]
  %v54 = vld [vmem:[%s0 + $0x84] sm:$0xf]
  %v55 = vld [vmem:[%s0 + $0x88] sm:$0xf]
  %v56 = vld [vmem:[%s0 + $0x8c] sm:$0xf]
  %v57 = vld [vmem:[%s0 + $0x90] sm:$0xf]
  %v58 = vld [vmem:[%s0 + $0x94] sm:$0xf]
  %v59 = vld [vmem:[%s0 + $0x98] sm:$0xf]
  %v60 = vld [vmem:[%s0 + $0x9c] sm:$0xf]
  %v61 = vld [vmem:[%s0 + $0xa0] sm:$0xf]
  %v62 = vld [vmem:[%s0 + $0xa4] sm:$0xf]
  %v63 = vld [vmem:[%s0 + $0xa8] sm:$0xf]
  %v64 = vld [vmem:[%s0 + $0xac] sm:$0xf]
  %v65 = vld [vmem:[%s0 + $0xb0] sm:$0xf]
  %v66 = vld [vmem:[%s0 + $0xb4] sm:$0xf]
  %v67 = vld [vmem:[%s0 + $0xb8] sm:$0xf]
  %v68 = vld [vmem:[%s0 + $0xbc] sm:$0xf]
  %v69 = vld [vmem:[%s0 + $0xc0] sm:$0xf]
  %v70 = vld [vmem:[%s0 + $0xc4] sm:$0xf]
  %v71 = vld [vmem:[%s0 + $0xc8] sm:$0xf]
  %v72 = vld [vmem:[%s0 + $0xcc] sm:$0xf]
  %v73 = vld [vmem:[%s0 + $0xd0] sm:$0xf]
  %v74 = vld [vmem:[%s0 + $0xd4] sm:$0xf]
  %v75 = vld [vmem:[%s0 + $0xd8] sm:$0xf]
  %v76 = vld [vmem:[%s0 + $0xdc] sm:$0xf]
  %v77 = vld [vmem:[%s0 + $0xe0] sm:$0xf]
  %v78 = vld [vmem:[%s0 + $0xe4] sm:$0xf]
  %v79 = vld [vmem:[%s0 + $0xe8] sm:$0xf]
  %v80 = vld [vmem:[%s0 + $0xec] sm:$0xf]
  %v81 = vld [vmem:[%s0 + $0xf0] sm:$0xf]
  %v82 = vld [vmem:[%s0 + $0xf4] sm:$0xf]
  %v83 = vld [vmem:[%s0 + $0xf8] sm:$0xf]
  %v84 = vld [vmem:[%s0 + $0xfc] sm:$0xf]
  %v85 = vld [vmem:[%s1] sm:$0xf]
  %v86 = vld [vmem:[%s1 + $0x4] sm:$0xf]
  %v87 = vld [vmem:[%s1 + $0x8] sm:$0xf]
  %v88 = vld [vmem:[%s1 + $0xc] sm:$0xf]
  %v89 = vld [vmem:[%s1 + $0x10] sm:$0xf]
  %v90 = vld [vmem:[%s1 + $0x14] sm:$0xf]
  %v91 = vld [vmem:[%s1 + $0x18] sm:$0xf]
  %v92 = vld [vmem:[%s1 + $0x1c] sm:$0xf]
  %v93 = vld [vmem:[%s1 + $0x20] sm:$0xf]
  %v94 = vld [vmem:[%s1 + $0x24] sm:$0xf]
  %v95 = vld [vmem:[%s1 + $0x28] sm:$0xf]
  %v96 = vld [vmem:[%s1 + $0x2c] sm:$0xf]
  %v97 = vld [vmem:[%s1 + $0x30] sm:$0xf]
  %v98 = vld [vmem:[%s1 + $0x34] sm:$0xf]
  %v99 = vld [vmem:[%s1 + $0x38] sm:$0xf]
  %v100 = vld [vmem:[%s1 + $0x3c] sm:$0xf]
  %v101 = vld [vmem:[%s2] sm:$0x1]
  %v103 = vlaneseq
  %v104 = vshrl.u32 %v103, 7
  %v105 = vsub.s32 0, %v104
  %v106 = vrot.slane %v101, %v105
  %v172 = vunpack.c.l.b16 %v21
  %v173 = vunpack.c.l.b16 %v22
  %v174 = vunpack.c.l.b16 %v23
  %v175 = vunpack.c.l.b16 %v24
  %v176 = vunpack.c.l.b16 %v25
  %v177 = vunpack.c.l.b16 %v26
  %v178 = vunpack.c.l.b16 %v27
  %v179 = vunpack.c.l.b16 %v28
  %v180 = vunpack.c.l.b16 %v29
  %v181 = vunpack.c.l.b16 %v30
  %v182 = vunpack.c.l.b16 %v31
  %v183 = vunpack.c.l.b16 %v32
  %v184 = vunpack.c.l.b16 %v33
  %v185 = vunpack.c.l.b16 %v34
  %v186 = vunpack.c.l.b16 %v35
  %v187 = vunpack.c.l.b16 %v36
  %v188 = vunpack.c.l.b16 %v37
  %v189 = vunpack.c.l.b16 %v38
  %v190 = vunpack.c.l.b16 %v39
  %v191 = vunpack.c.l.b16 %v40
  %v192 = vunpack.c.l.b16 %v41
  %v193 = vunpack.c.l.b16 %v42
  %v194 = vunpack.c.l.b16 %v43
  %v195 = vunpack.c.l.b16 %v44
  %v196 = vunpack.c.l.b16 %v45
  %v197 = vunpack.c.l.b16 %v46
  %v198 = vunpack.c.l.b16 %v47
  %v199 = vunpack.c.l.b16 %v48
  %v200 = vunpack.c.l.b16 %v49
  %v201 = vunpack.c.l.b16 %v50
  %v202 = vunpack.c.l.b16 %v51
  %v203 = vunpack.c.l.b16 %v52
  %v204 = vunpack.c.l.b16 %v53
  %v205 = vunpack.c.l.b16 %v54
  %v206 = vunpack.c.l.b16 %v55
  %v207 = vunpack.c.l.b16 %v56
  %v208 = vunpack.c.l.b16 %v57
  %v209 = vunpack.c.l.b16 %v58
  %v210 = vunpack.c.l.b16 %v59
  %v211 = vunpack.c.l.b16 %v60
  %v212 = vunpack.c.l.b16 %v61
  %v213 = vunpack.c.l.b16 %v62
  %v214 = vunpack.c.l.b16 %v63
  %v215 = vunpack.c.l.b16 %v64
  %v216 = vunpack.c.l.b16 %v65
  %v217 = vunpack.c.l.b16 %v66
  %v218 = vunpack.c.l.b16 %v67
  %v219 = vunpack.c.l.b16 %v68
  %v220 = vunpack.c.l.b16 %v69
  %v221 = vunpack.c.l.b16 %v70
  %v222 = vunpack.c.l.b16 %v71
  %v223 = vunpack.c.l.b16 %v72
  %v224 = vunpack.c.l.b16 %v73
  %v225 = vunpack.c.l.b16 %v74
  %v226 = vunpack.c.l.b16 %v75
  %v227 = vunpack.c.l.b16 %v76
  %v228 = vunpack.c.l.b16 %v77
  %v229 = vunpack.c.l.b16 %v78
  %v230 = vunpack.c.l.b16 %v79
  %v231 = vunpack.c.l.b16 %v80
  %v232 = vunpack.c.l.b16 %v81
  %v233 = vunpack.c.l.b16 %v82
  %v234 = vunpack.c.l.b16 %v83
  %v235 = vunpack.c.l.b16 %v84
  %v236 = vpack.c.b16 %v173, %v172
  %v237 = vpack.c.b16 %v175, %v174
  %v238 = vpack.c.b16 %v177, %v176
  %v239 = vpack.c.b16 %v179, %v178
  %v240 = vpack.c.b16 %v181, %v180
  %v241 = vpack.c.b16 %v183, %v182
  %v242 = vpack.c.b16 %v185, %v184
  %v243 = vpack.c.b16 %v187, %v186
  %v244 = vpack.c.b16 %v189, %v188
  %v245 = vpack.c.b16 %v191, %v190
  %v246 = vpack.c.b16 %v193, %v192
  %v247 = vpack.c.b16 %v195, %v194
  %v248 = vpack.c.b16 %v197, %v196
  %v249 = vpack.c.b16 %v199, %v198
  %v250 = vpack.c.b16 %v201, %v200
  %v251 = vpack.c.b16 %v203, %v202
  %v252 = vpack.c.b16 %v205, %v204
  %v253 = vpack.c.b16 %v207, %v206
  %v254 = vpack.c.b16 %v209, %v208
  %v255 = vpack.c.b16 %v211, %v210
  %v256 = vpack.c.b16 %v213, %v212
  %v257 = vpack.c.b16 %v215, %v214
  %v258 = vpack.c.b16 %v217, %v216
  %v259 = vpack.c.b16 %v219, %v218
  %v260 = vpack.c.b16 %v221, %v220
  %v261 = vpack.c.b16 %v223, %v222
  %v262 = vpack.c.b16 %v225, %v224
  %v263 = vpack.c.b16 %v227, %v226
  %v264 = vpack.c.b16 %v229, %v228
  %v265 = vpack.c.b16 %v231, %v230
  %v266 = vpack.c.b16 %v233, %v232
  %v267 = vpack.c.b16 %v235, %v234
  %v316 = vunpack.c.l.b16 %v85
  %v317 = vunpack.c.l.b16 %v86
  %v318 = vunpack.c.l.b16 %v87
  %v319 = vunpack.c.l.b16 %v88
  %v320 = vunpack.c.l.b16 %v89
  %v321 = vunpack.c.l.b16 %v90
  %v322 = vunpack.c.l.b16 %v91
  %v323 = vunpack.c.l.b16 %v92
  %v324 = vunpack.c.l.b16 %v93
  %v325 = vunpack.c.l.b16 %v94
  %v326 = vunpack.c.l.b16 %v95
  %v327 = vunpack.c.l.b16 %v96
  %v328 = vunpack.c.l.b16 %v97
  %v329 = vunpack.c.l.b16 %v98
  %v330 = vunpack.c.l.b16 %v99
  %v331 = vunpack.c.l.b16 %v100
  %v332 = vpack.c.b16 %v317, %v316
  %v333 = vpack.c.b16 %v319, %v318
  %v334 = vpack.c.b16 %v321, %v320
  %v335 = vpack.c.b16 %v323, %v322
  %v336 = vpack.c.b16 %v325, %v324
  %v337 = vpack.c.b16 %v327, %v326
  %v338 = vpack.c.b16 %v329, %v328
  %v339 = vpack.c.b16 %v331, %v330
  %348 = vmatprep.subr.bf16.mxu0 0
  %349 = vmatpush1.bf16.msra.mxu0 %v332
  %350 = vmatprep.subr.bf16.mxu0 0
  %351 = vmatpush1.bf16.msra.mxu0 %v333
  %352 = vmatprep.subr.bf16.mxu0 0
  %353 = vmatpush1.bf16.msra.mxu0 %v334
  %354 = vmatprep.subr.bf16.mxu0 0
  %355 = vmatpush1.bf16.msra.mxu0 %v335
  %356 = vmatprep.subr.bf16.mxu0 0
  %357 = vmatpush1.bf16.msra.mxu0 %v336
  %358 = vmatprep.subr.bf16.mxu0 0
  %359 = vmatpush1.bf16.msra.mxu0 %v337
  %360 = vmatprep.subr.bf16.mxu0 0
  %361 = vmatpush1.bf16.msra.mxu0 %v338
  %362 = vmatprep.subr.bf16.mxu0 0
  %363 = vmatpush1.bf16.msra.mxu0 %v339
  %364 = vmatprep.subr.bf16.mxu0 0
  %365 = vmatpush1.bf16.msra.mxu0 0
  %366 = vmatprep.subr.bf16.mxu0 0
  %367 = vmatpush1.bf16.msra.mxu0 0
  %368 = vmatprep.subr.bf16.mxu0 0
  %369 = vmatpush1.bf16.msra.mxu0 0
  %370 = vmatprep.subr.bf16.mxu0 0
  %371 = vmatpush1.bf16.msra.mxu0 0
  %372 = vmatprep.subr.bf16.mxu0 0
  %373 = vmatpush1.bf16.msra.mxu0 0
  %374 = vmatprep.subr.bf16.mxu0 0
  %375 = vmatpush1.bf16.msra.mxu0 0
  %376 = vmatprep.subr.bf16.mxu0 0
  %377 = vmatpush1.bf16.msra.mxu0 0
  %378 = vmatprep.subr.bf16.mxu0 0
  %379 = vmatpush1.bf16.msra.mxu0 0
  %380 = vmatprep.mubr.bf16.mxu0 0
  %381 = vmatmul.mubr.bf16.gmra.mrb[0].mxu0 %v236
  %v382 = vpop.f32.mrb[0].mxu0
  %v383 = vadd.f32 %v106, %v382
  %v384 = vpop.f32.mrb[0].mxu0
  %v385 = vpop.f32.mrb[0].mxu0
  %v386 = vadd.f32 %v106, %v385
  %v387 = vpop.f32.mrb[0].mxu0
  %388 = vmatprep.mubr.bf16.mxu0 0
  %389 = vmatmul.mubr.bf16.gmra.mrb[0].mxu0 %v237
  %v390 = vpop.f32.mrb[0].mxu0
  %v391 = vadd.f32 %v106, %v390
  %v392 = vpop.f32.mrb[0].mxu0
  %v393 = vpop.f32.mrb[0].mxu0
  %v394 = vadd.f32 %v106, %v393
  %v395 = vpop.f32.mrb[0].mxu0
  %396 = vmatprep.mubr.bf16.mxu0 0
  %397 = vmatmul.mubr.bf16.gmra.mrb[0].mxu0 %v238
  %v398 = vpop.f32.mrb[0].mxu0
  %v399 = vadd.f32 %v106, %v398
  %v400 = vpop.f32.mrb[0].mxu0
  %v401 = vpop.f32.mrb[0].mxu0
  %v402 = vadd.f32 %v106, %v401
  %v403 = vpop.f32.mrb[0].mxu0
  %404 = vmatprep.mubr.bf16.mxu0 0
  %405 = vmatmul.mubr.bf16.gmra.mrb[0].mxu0 %v239
  %v406 = vpop.f32.mrb[0].mxu0
  %v407 = vadd.f32 %v106, %v406
  %v408 = vpop.f32.mrb[0].mxu0
  %v409 = vpop.f32.mrb[0].mxu0
  %v410 = vadd.f32 %v106, %v409
  %v411 = vpop.f32.mrb[0].mxu0
  %412 = vmatprep.mubr.bf16.mxu0 0
  %413 = vmatmul.mubr.bf16.gmra.mrb[0].mxu0 %v240
  %v414 = vpop.f32.mrb[0].mxu0
  %v415 = vadd.f32 %v106, %v414
  %v416 = vpop.f32.mrb[0].mxu0
  %v417 = vpop.f32.mrb[0].mxu0
  %v418 = vadd.f32 %v106, %v417
  %v419 = vpop.f32.mrb[0].mxu0
  %420 = vmatprep.mubr.bf16.mxu0 0
  %421 = vmatmul.mubr.bf16.gmra.mrb[0].mxu0 %v241
  %v422 = vpop.f32.mrb[0].mxu0
  %v423 = vadd.f32 %v106, %v422
  %v424 = vpop.f32.mrb[0].mxu0
  %v425 = vpop.f32.mrb[0].mxu0
  %v426 = vadd.f32 %v106, %v425
  %v427 = vpop.f32.mrb[0].mxu0
  %428 = vmatprep.mubr.bf16.mxu0 0
  %429 = vmatmul.mubr.bf16.gmra.mrb[0].mxu0 %v242
  %v430 = vpop.f32.mrb[0].mxu0
  %v431 = vadd.f32 %v106, %v430
  %v432 = vpop.f32.mrb[0].mxu0
  %v433 = vpop.f32.mrb[0].mxu0
  %v434 = vadd.f32 %v106, %v433
  %v435 = vpop.f32.mrb[0].mxu0
  %436 = vmatprep.mubr.bf16.mxu0 0
  %437 = vmatmul.mubr.bf16.gmra.mrb[0].mxu0 %v243
  %v438 = vpop.f32.mrb[0].mxu0
  %v439 = vadd.f32 %v106, %v438
  %v440 = vpop.f32.mrb[0].mxu0
  %v441 = vpop.f32.mrb[0].mxu0
  %v442 = vadd.f32 %v106, %v441
  %v443 = vpop.f32.mrb[0].mxu0
  %444 = vmatprep.mubr.bf16.mxu0 0
  %445 = vmatmul.mubr.bf16.gmra.mrb[0].mxu0 %v244
  %v446 = vpop.f32.mrb[0].mxu0
  %v447 = vadd.f32 %v106, %v446
  %v448 = vpop.f32.mrb[0].mxu0
  %v449 = vpop.f32.mrb[0].mxu0
  %v450 = vadd.f32 %v106, %v449
  %v451 = vpop.f32.mrb[0].mxu0
  %452 = vmatprep.mubr.bf16.mxu0 0
  %453 = vmatmul.mubr.bf16.gmra.mrb[0].mxu0 %v245
  %v454 = vpop.f32.mrb[0].mxu0
  %v455 = vadd.f32 %v106, %v454
  %v456 = vpop.f32.mrb[0].mxu0
  %v457 = vpop.f32.mrb[0].mxu0
  %v458 = vadd.f32 %v106, %v457
  %v459 = vpop.f32.mrb[0].mxu0
  %460 = vmatprep.mubr.bf16.mxu0 0
  %461 = vmatmul.mubr.bf16.gmra.mrb[0].mxu0 %v246
  %v462 = vpop.f32.mrb[0].mxu0
  %v463 = vadd.f32 %v106, %v462
  %v464 = vpop.f32.mrb[0].mxu0
  %v465 = vpop.f32.mrb[0].mxu0
  %v466 = vadd.f32 %v106, %v465
  %v467 = vpop.f32.mrb[0].mxu0
  %468 = vmatprep.mubr.bf16.mxu0 0
  %469 = vmatmul.mubr.bf16.gmra.mrb[0].mxu0 %v247
  %v470 = vpop.f32.mrb[0].mxu0
  %v471 = vadd.f32 %v106, %v470
  %v472 = vpop.f32.mrb[0].mxu0
  %v473 = vpop.f32.mrb[0].mxu0
  %v474 = vadd.f32 %v106, %v473
  %v475 = vpop.f32.mrb[0].mxu0
  %476 = vmatprep.mubr.bf16.mxu0 0
  %477 = vmatmul.mubr.bf16.gmra.mrb[0].mxu0 %v248
  %v478 = vpop.f32.mrb[0].mxu0
  %v479 = vadd.f32 %v106, %v478
  %v480 = vpop.f32.mrb[0].mxu0
  %v481 = vpop.f32.mrb[0].mxu0
  %v482 = vadd.f32 %v106, %v481
  %v483 = vpop.f32.mrb[0].mxu0
  %484 = vmatprep.mubr.bf16.mxu0 0
  %485 = vmatmul.mubr.bf16.gmra.mrb[0].mxu0 %v249
  %v486 = vpop.f32.mrb[0].mxu0
  %v487 = vadd.f32 %v106, %v486
  %v488 = vpop.f32.mrb[0].mxu0
  %v489 = vpop.f32.mrb[0].mxu0
  %v490 = vadd.f32 %v106, %v489
  %v491 = vpop.f32.mrb[0].mxu0
  %492 = vmatprep.mubr.bf16.mxu0 0
  %493 = vmatmul.mubr.bf16.gmra.mrb[0].mxu0 %v250
  %v494 = vpop.f32.mrb[0].mxu0
  %v495 = vadd.f32 %v106, %v494
  %v496 = vpop.f32.mrb[0].mxu0
  %v497 = vpop.f32.mrb[0].mxu0
  %v498 = vadd.f32 %v106, %v497
  %v499 = vpop.f32.mrb[0].mxu0
  %500 = vmatprep.mubr.bf16.mxu0 0
  %501 = vmatmul.mubr.bf16.gmra.mrb[0].mxu0 %v251
  %v502 = vpop.f32.mrb[0].mxu0
  %v503 = vadd.f32 %v106, %v502
  %v504 = vpop.f32.mrb[0].mxu0
  %v505 = vpop.f32.mrb[0].mxu0
  %v506 = vadd.f32 %v106, %v505
  %v507 = vpop.f32.mrb[0].mxu0
  %508 = vmatprep.mubr.bf16.mxu0 0
  %509 = vmatmul.mubr.bf16.gmra.mrb[0].mxu0 %v252
  %v510 = vpop.f32.mrb[0].mxu0
  %v511 = vadd.f32 %v106, %v510
  %v512 = vpop.f32.mrb[0].mxu0
  %v513 = vpop.f32.mrb[0].mxu0
  %v514 = vadd.f32 %v106, %v513
  %v515 = vpop.f32.mrb[0].mxu0
  %516 = vmatprep.mubr.bf16.mxu0 0
  %517 = vmatmul.mubr.bf16.gmra.mrb[0].mxu0 %v253
  %v518 = vpop.f32.mrb[0].mxu0
  %v519 = vadd.f32 %v106, %v518
  %v520 = vpop.f32.mrb[0].mxu0
  %v521 = vpop.f32.mrb[0].mxu0
  %v522 = vadd.f32 %v106, %v521
  %v523 = vpop.f32.mrb[0].mxu0
  %524 = vmatprep.mubr.bf16.mxu0 0
  %525 = vmatmul.mubr.bf16.gmra.mrb[0].mxu0 %v254
  %v526 = vpop.f32.mrb[0].mxu0
  %v527 = vadd.f32 %v106, %v526
  %v528 = vpop.f32.mrb[0].mxu0
  %v529 = vpop.f32.mrb[0].mxu0
  %v530 = vadd.f32 %v106, %v529
  %v531 = vpop.f32.mrb[0].mxu0
  %532 = vmatprep.mubr.bf16.mxu0 0
  %533 = vmatmul.mubr.bf16.gmra.mrb[0].mxu0 %v255
  %v534 = vpop.f32.mrb[0].mxu0
  %v535 = vadd.f32 %v106, %v534
  %v536 = vpop.f32.mrb[0].mxu0
  %v537 = vpop.f32.mrb[0].mxu0
  %v538 = vadd.f32 %v106, %v537
  %v539 = vpop.f32.mrb[0].mxu0
  %540 = vmatprep.mubr.bf16.mxu0 0
  %541 = vmatmul.mubr.bf16.gmra.mrb[0].mxu0 %v256
  %v542 = vpop.f32.mrb[0].mxu0
  %v543 = vadd.f32 %v106, %v542
  %v544 = vpop.f32.mrb[0].mxu0
  %v545 = vpop.f32.mrb[0].mxu0
  %v546 = vadd.f32 %v106, %v545
  %v547 = vpop.f32.mrb[0].mxu0
  %548 = vmatprep.mubr.bf16.mxu0 0
  %549 = vmatmul.mubr.bf16.gmra.mrb[0].mxu0 %v257
  %v550 = vpop.f32.mrb[0].mxu0
  %v551 = vadd.f32 %v106, %v550
  %v552 = vpop.f32.mrb[0].mxu0
  %v553 = vpop.f32.mrb[0].mxu0
  %v554 = vadd.f32 %v106, %v553
  %v555 = vpop.f32.mrb[0].mxu0
  %556 = vmatprep.mubr.bf16.mxu0 0
  %557 = vmatmul.mubr.bf16.gmra.mrb[0].mxu0 %v258
  %v558 = vpop.f32.mrb[0].mxu0
  %v559 = vadd.f32 %v106, %v558
  %v560 = vpop.f32.mrb[0].mxu0
  %v561 = vpop.f32.mrb[0].mxu0
  %v562 = vadd.f32 %v106, %v561
  %v563 = vpop.f32.mrb[0].mxu0
  %564 = vmatprep.mubr.bf16.mxu0 0
  %565 = vmatmul.mubr.bf16.gmra.mrb[0].mxu0 %v259
  %v566 = vpop.f32.mrb[0].mxu0
  %v567 = vadd.f32 %v106, %v566
  %v568 = vpop.f32.mrb[0].mxu0
  %v569 = vpop.f32.mrb[0].mxu0
  %v570 = vadd.f32 %v106, %v569
  %v571 = vpop.f32.mrb[0].mxu0
  %572 = vmatprep.mubr.bf16.mxu0 0
  %573 = vmatmul.mubr.bf16.gmra.mrb[0].mxu0 %v260
  %v574 = vpop.f32.mrb[0].mxu0
  %v575 = vadd.f32 %v106, %v574
  %v576 = vpop.f32.mrb[0].mxu0
  %v577 = vpop.f32.mrb[0].mxu0
  %v578 = vadd.f32 %v106, %v577
  %v579 = vpop.f32.mrb[0].mxu0
  %580 = vmatprep.mubr.bf16.mxu0 0
  %581 = vmatmul.mubr.bf16.gmra.mrb[0].mxu0 %v261
  %v582 = vpop.f32.mrb[0].mxu0
  %v583 = vadd.f32 %v106, %v582
  %v584 = vpop.f32.mrb[0].mxu0
  %v585 = vpop.f32.mrb[0].mxu0
  %v586 = vadd.f32 %v106, %v585
  %v587 = vpop.f32.mrb[0].mxu0
  %588 = vmatprep.mubr.bf16.mxu0 0
  %589 = vmatmul.mubr.bf16.gmra.mrb[0].mxu0 %v262
  %v590 = vpop.f32.mrb[0].mxu0
  %v591 = vadd.f32 %v106, %v590
  %v592 = vpop.f32.mrb[0].mxu0
  %v593 = vpop.f32.mrb[0].mxu0
  %v594 = vadd.f32 %v106, %v593
  %v595 = vpop.f32.mrb[0].mxu0
  %596 = vmatprep.mubr.bf16.mxu0 0
  %597 = vmatmul.mubr.bf16.gmra.mrb[0].mxu0 %v263
  %v598 = vpop.f32.mrb[0].mxu0
  %v599 = vadd.f32 %v106, %v598
  %v600 = vpop.f32.mrb[0].mxu0
  %v601 = vpop.f32.mrb[0].mxu0
  %v602 = vadd.f32 %v106, %v601
  %v603 = vpop.f32.mrb[0].mxu0
  %604 = vmatprep.mubr.bf16.mxu0 0
  %605 = vmatmul.mubr.bf16.gmra.mrb[0].mxu0 %v264
  %v606 = vpop.f32.mrb[0].mxu0
  %v607 = vadd.f32 %v106, %v606
  %v608 = vpop.f32.mrb[0].mxu0
  %v609 = vpop.f32.mrb[0].mxu0
  %v610 = vadd.f32 %v106, %v609
  %v611 = vpop.f32.mrb[0].mxu0
  %612 = vmatprep.mubr.bf16.mxu0 0
  %613 = vmatmul.mubr.bf16.gmra.mrb[0].mxu0 %v265
  %v614 = vpop.f32.mrb[0].mxu0
  %v615 = vadd.f32 %v106, %v614
  %v616 = vpop.f32.mrb[0].mxu0
  %v617 = vpop.f32.mrb[0].mxu0
  %v618 = vadd.f32 %v106, %v617
  %v619 = vpop.f32.mrb[0].mxu0
  %620 = vmatprep.mubr.bf16.mxu0 0
  %621 = vmatmul.mubr.bf16.gmra.mrb[0].mxu0 %v266
  %v622 = vpop.f32.mrb[0].mxu0
  %v623 = vadd.f32 %v106, %v622
  %v624 = vpop.f32.mrb[0].mxu0
  %v625 = vpop.f32.mrb[0].mxu0
  %v626 = vadd.f32 %v106, %v625
  %v627 = vpop.f32.mrb[0].mxu0
  %628 = vmatprep.mubr.bf16.mxu0 0
  %629 = vmatmul.mubr.bf16.gmra.mrb[0].mxu0 %v267
  %v630 = vpop.f32.mrb[0].mxu0
  %v631 = vadd.f32 %v106, %v630
  %v632 = vpop.f32.mrb[0].mxu0
  %v633 = vpop.f32.mrb[0].mxu0
  %v634 = vadd.f32 %v106, %v633
  %v635 = vpop.f32.mrb[0].mxu0
  %636 = vdwg.mxu0
  %v637 = vadd.f32 %v383, %v386
  %v638 = vadd.f32 %v637, %v391
  %v639 = vadd.f32 %v638, %v394
  %v640 = vadd.f32 %v639, %v399
  %v641 = vadd.f32 %v640, %v402
  %v642 = vadd.f32 %v641, %v407
  %v643 = vadd.f32 %v642, %v410
  %v644 = vadd.f32 %v643, %v415
  %v645 = vadd.f32 %v644, %v418
  %v646 = vadd.f32 %v645, %v423
  %v647 = vadd.f32 %v646, %v426
  %v648 = vadd.f32 %v647, %v431
  %v649 = vadd.f32 %v648, %v434
  %v650 = vadd.f32 %v649, %v439
  %v651 = vadd.f32 %v650, %v442
  %v652 = vadd.f32 %v651, %v447
  %v653 = vadd.f32 %v652, %v450
  %v654 = vadd.f32 %v653, %v455
  %v655 = vadd.f32 %v654, %v458
  %v656 = vadd.f32 %v655, %v463
  %v657 = vadd.f32 %v656, %v466
  %v658 = vadd.f32 %v657, %v471
  %v659 = vadd.f32 %v658, %v474
  %v660 = vadd.f32 %v659, %v479
  %v661 = vadd.f32 %v660, %v482
  %v662 = vadd.f32 %v661, %v487
  %v663 = vadd.f32 %v662, %v490
  %v664 = vadd.f32 %v663, %v495
  %v665 = vadd.f32 %v664, %v498
  %v666 = vadd.f32 %v665, %v503
  %v667 = vadd.f32 %v666, %v506
  %v668 = vadd.f32 %v667, %v511
  %v669 = vadd.f32 %v668, %v514
  %v670 = vadd.f32 %v669, %v519
  %v671 = vadd.f32 %v670, %v522
  %v672 = vadd.f32 %v671, %v527
  %v673 = vadd.f32 %v672, %v530
  %v674 = vadd.f32 %v673, %v535
  %v675 = vadd.f32 %v674, %v538
  %v676 = vadd.f32 %v675, %v543
  %v677 = vadd.f32 %v676, %v546
  %v678 = vadd.f32 %v677, %v551
  %v679 = vadd.f32 %v678, %v554
  %v680 = vadd.f32 %v679, %v559
  %v681 = vadd.f32 %v680, %v562
  %v682 = vadd.f32 %v681, %v567
  %v683 = vadd.f32 %v682, %v570
  %v684 = vadd.f32 %v683, %v575
  %v685 = vadd.f32 %v684, %v578
  %v686 = vadd.f32 %v685, %v583
  %v687 = vadd.f32 %v686, %v586
  %v688 = vadd.f32 %v687, %v591
  %v689 = vadd.f32 %v688, %v594
  %v690 = vadd.f32 %v689, %v599
  %v691 = vadd.f32 %v690, %v602
  %v692 = vadd.f32 %v691, %v607
  %v693 = vadd.f32 %v692, %v610
  %v694 = vadd.f32 %v693, %v615
  %v695 = vadd.f32 %v694, %v618
  %v696 = vadd.f32 %v695, %v623
  %v697 = vadd.f32 %v696, %v626
  %v698 = vadd.f32 %v697, %v631
  %v699 = vadd.f32 %v698, %v634
  %v700 = vrot.slane %v699, 4
  %v701 = vadd.f32 %v699, %v700
  %v702 = vrot.slane %v701, 2
  %v703 = vadd.f32 %v701, %v702
  %v704 = vrot.slane %v703, 1
  %v705 = vadd.f32 %v703, %v704
  %v706 = vmul.f32 %v383, %v383
  %v707 = vmul.f32 %v386, %v386
  %v708 = vmul.f32 %v391, %v391
  %v709 = vmul.f32 %v394, %v394
  %v710 = vmul.f32 %v399, %v399
  %v711 = vmul.f32 %v402, %v402
  %v712 = vmul.f32 %v407, %v407
  %v713 = vmul.f32 %v410, %v410
  %v714 = vmul.f32 %v415, %v415
  %v715 = vmul.f32 %v418, %v418
  %v716 = vmul.f32 %v423, %v423
  %v717 = vmul.f32 %v426, %v426
  %v718 = vmul.f32 %v431, %v431
  %v719 = vmul.f32 %v434, %v434
  %v720 = vmul.f32 %v439, %v439
  %v721 = vmul.f32 %v442, %v442
  %v722 = vmul.f32 %v447, %v447
  %v723 = vmul.f32 %v450, %v450
  %v724 = vmul.f32 %v455, %v455
  %v725 = vmul.f32 %v458, %v458
  %v726 = vmul.f32 %v463, %v463
  %v727 = vmul.f32 %v466, %v466
  %v728 = vmul.f32 %v471, %v471
  %v729 = vmul.f32 %v474, %v474
  %v730 = vmul.f32 %v479, %v479
  %v731 = vmul.f32 %v482, %v482
  %v732 = vmul.f32 %v487, %v487
  %v733 = vmul.f32 %v490, %v490
  %v734 = vmul.f32 %v495, %v495
  %v735 = vmul.f32 %v498, %v498
  %v736 = vmul.f32 %v503, %v503
  %v737 = vmul.f32 %v506, %v506
  %v738 = vmul.f32 %v511, %v511
  %v739 = vmul.f32 %v514, %v514
  %v740 = vmul.f32 %v519, %v519
  %v741 = vmul.f32 %v522, %v522
  %v742 = vmul.f32 %v527, %v527
  %v743 = vmul.f32 %v530, %v530
  %v744 = vmul.f32 %v535, %v535
  %v745 = vmul.f32 %v538, %v538
  %v746 = vmul.f32 %v543, %v543
  %v747 = vmul.f32 %v546, %v546
  %v748 = vmul.f32 %v551, %v551
  %v749 = vmul.f32 %v554, %v554
  %v750 = vmul.f32 %v559, %v559
  %v751 = vmul.f32 %v562, %v562
  %v752 = vmul.f32 %v567, %v567
  %v753 = vmul.f32 %v570, %v570
  %v754 = vmul.f32 %v575, %v575
  %v755 = vmul.f32 %v578, %v578
  %v756 = vmul.f32 %v583, %v583
  %v757 = vmul.f32 %v586, %v586
  %v758 = vmul.f32 %v591, %v591
  %v759 = vmul.f32 %v594, %v594
  %v760 = vmul.f32 %v599, %v599
  %v761 = vmul.f32 %v602, %v602
  %v762 = vmul.f32 %v607, %v607
  %v763 = vmul.f32 %v610, %v610
  %v764 = vmul.f32 %v615, %v615
  %v765 = vmul.f32 %v618, %v618
  %v766 = vmul.f32 %v623, %v623
  %v767 = vmul.f32 %v626, %v626
  %v768 = vmul.f32 %v631, %v631
  %v769 = vmul.f32 %v634, %v634
  %v770 = vadd.f32 %v706, %v707
  %v771 = vadd.f32 %v770, %v708
  %v772 = vadd.f32 %v771, %v709
  %v773 = vadd.f32 %v772, %v710
  %v774 = vadd.f32 %v773, %v711
  %v775 = vadd.f32 %v774, %v712
  %v776 = vadd.f32 %v775, %v713
  %v777 = vadd.f32 %v776, %v714
  %v778 = vadd.f32 %v777, %v715
  %v779 = vadd.f32 %v778, %v716
  %v780 = vadd.f32 %v779, %v717
  %v781 = vadd.f32 %v780, %v718
  %v782 = vadd.f32 %v781, %v719
  %v783 = vadd.f32 %v782, %v720
  %v784 = vadd.f32 %v783, %v721
  %v785 = vadd.f32 %v784, %v722
  %v786 = vadd.f32 %v785, %v723
  %v787 = vadd.f32 %v786, %v724
  %v788 = vadd.f32 %v787, %v725
  %v789 = vadd.f32 %v788, %v726
  %v790 = vadd.f32 %v789, %v727
  %v791 = vadd.f32 %v790, %v728
  %v792 = vadd.f32 %v791, %v729
  %v793 = vadd.f32 %v792, %v730
  %v794 = vadd.f32 %v793, %v731
  %v795 = vadd.f32 %v794, %v732
  %v796 = vadd.f32 %v795, %v733
  %v797 = vadd.f32 %v796, %v734
  %v798 = vadd.f32 %v797, %v735
  %v799 = vadd.f32 %v798, %v736
  %v800 = vadd.f32 %v799, %v737
  %v801 = vadd.f32 %v800, %v738
  %v802 = vadd.f32 %v801, %v739
  %v803 = vadd.f32 %v802, %v740
  %v804 = vadd.f32 %v803, %v741
  %v805 = vadd.f32 %v804, %v742
  %v806 = vadd.f32 %v805, %v743
  %v807 = vadd.f32 %v806, %v744
  %v808 = vadd.f32 %v807, %v745
  %v809 = vadd.f32 %v808, %v746
  %v810 = vadd.f32 %v809, %v747
  %v811 = vadd.f32 %v810, %v748
  %v812 = vadd.f32 %v811, %v749
  %v813 = vadd.f32 %v812, %v750
  %v814 = vadd.f32 %v813, %v751
  %v815 = vadd.f32 %v814, %v752
  %v816 = vadd.f32 %v815, %v753
  %v817 = vadd.f32 %v816, %v754
  %v818 = vadd.f32 %v817, %v755
  %v819 = vadd.f32 %v818, %v756
  %v820 = vadd.f32 %v819, %v757
  %v821 = vadd.f32 %v820, %v758
  %v822 = vadd.f32 %v821, %v759
  %v823 = vadd.f32 %v822, %v760
  %v824 = vadd.f32 %v823, %v761
  %v825 = vadd.f32 %v824, %v762
  %v826 = vadd.f32 %v825, %v763
  %v827 = vadd.f32 %v826, %v764
  %v828 = vadd.f32 %v827, %v765
  %v829 = vadd.f32 %v828, %v766
  %v830 = vadd.f32 %v829, %v767
  %v831 = vadd.f32 %v830, %v768
  %v832 = vadd.f32 %v831, %v769
  %v833 = vrot.slane %v832, 4
  %v834 = vadd.f32 %v832, %v833
  %v835 = vrot.slane %v834, 2
  %v836 = vadd.f32 %v834, %v835
  %v837 = vrot.slane %v836, 1
  %v838 = vadd.f32 %v836, %v837
  %v839 = vmul.f32 %v705, 0.001953125
  %v840 = vmul.f32 %v838, 0.001953125
  %v841 = vmul.f32 %v839, %v839
  %v842 = vsub.f32 %v840, %v841
  %v843 = vmax.f32 %v842, 0.0
  %v844 = vadd.f32 %v843, 1e-05
  %v845 = vrsqrt.pop %v844
  %v846 = vld [vmem:[%s3] sm:$0x1]
  %v847 = vmul.f32 %v845, %v846
  %v848 = vsub.f32 %v383, %v839
  %v849 = vsub.f32 %v386, %v839
  %v850 = vsub.f32 %v391, %v839
  %v851 = vsub.f32 %v394, %v839
  %v852 = vsub.f32 %v399, %v839
  %v853 = vsub.f32 %v402, %v839
  %v854 = vsub.f32 %v407, %v839
  %v855 = vsub.f32 %v410, %v839
  %v856 = vsub.f32 %v415, %v839
  %v857 = vsub.f32 %v418, %v839
  %v858 = vsub.f32 %v423, %v839
  %v859 = vsub.f32 %v426, %v839
  %v860 = vsub.f32 %v431, %v839
  %v861 = vsub.f32 %v434, %v839
  %v862 = vsub.f32 %v439, %v839
  %v863 = vsub.f32 %v442, %v839
  %v864 = vsub.f32 %v447, %v839
  %v865 = vsub.f32 %v450, %v839
  %v866 = vsub.f32 %v455, %v839
  %v867 = vsub.f32 %v458, %v839
  %v868 = vsub.f32 %v463, %v839
  %v869 = vsub.f32 %v466, %v839
  %v870 = vsub.f32 %v471, %v839
  %v871 = vsub.f32 %v474, %v839
  %v872 = vsub.f32 %v479, %v839
  %v873 = vsub.f32 %v482, %v839
  %v874 = vsub.f32 %v487, %v839
  %v875 = vsub.f32 %v490, %v839
  %v876 = vsub.f32 %v495, %v839
  %v877 = vsub.f32 %v498, %v839
  %v878 = vsub.f32 %v503, %v839
  %v879 = vsub.f32 %v506, %v839
  %v880 = vsub.f32 %v511, %v839
  %v881 = vsub.f32 %v514, %v839
  %v882 = vsub.f32 %v519, %v839
  %v883 = vsub.f32 %v522, %v839
  %v884 = vsub.f32 %v527, %v839
  %v885 = vsub.f32 %v530, %v839
  %v886 = vsub.f32 %v535, %v839
  %v887 = vsub.f32 %v538, %v839
  %v888 = vsub.f32 %v543, %v839
  %v889 = vsub.f32 %v546, %v839
  %v890 = vsub.f32 %v551, %v839
  %v891 = vsub.f32 %v554, %v839
  %v892 = vsub.f32 %v559, %v839
  %v893 = vsub.f32 %v562, %v839
  %v894 = vsub.f32 %v567, %v839
  %v895 = vsub.f32 %v570, %v839
  %v896 = vsub.f32 %v575, %v839
  %v897 = vsub.f32 %v578, %v839
  %v898 = vsub.f32 %v583, %v839
  %v899 = vsub.f32 %v586, %v839
  %v900 = vsub.f32 %v591, %v839
  %v901 = vsub.f32 %v594, %v839
  %v902 = vsub.f32 %v599, %v839
  %v903 = vsub.f32 %v602, %v839
  %v904 = vsub.f32 %v607, %v839
  %v905 = vsub.f32 %v610, %v839
  %v906 = vsub.f32 %v615, %v839
  %v907 = vsub.f32 %v618, %v839
  %v908 = vsub.f32 %v623, %v839
  %v909 = vsub.f32 %v626, %v839
  %v910 = vsub.f32 %v631, %v839
  %v911 = vsub.f32 %v634, %v839
  %v912 = vlaneseq
  %v913 = vshrl.u32 %v912, 7
  %v914 = vsub.s32 0, %v913
  %v915 = vrot.slane %v847, %v914
  %v916 = vmul.f32 %v848, %v915
  %v917 = vmul.f32 %v849, %v915
  %v918 = vmul.f32 %v850, %v915
  %v919 = vmul.f32 %v851, %v915
  %v920 = vmul.f32 %v852, %v915
  %v921 = vmul.f32 %v853, %v915
  %v922 = vmul.f32 %v854, %v915
  %v923 = vmul.f32 %v855, %v915
  %v924 = vmul.f32 %v856, %v915
  %v925 = vmul.f32 %v857, %v915
  %v926 = vmul.f32 %v858, %v915
  %v927 = vmul.f32 %v859, %v915
  %v928 = vmul.f32 %v860, %v915
  %v929 = vmul.f32 %v861, %v915
  %v930 = vmul.f32 %v862, %v915
  %v931 = vmul.f32 %v863, %v915
  %v932 = vmul.f32 %v864, %v915
  %v933 = vmul.f32 %v865, %v915
  %v934 = vmul.f32 %v866, %v915
  %v935 = vmul.f32 %v867, %v915
  %v936 = vmul.f32 %v868, %v915
  %v937 = vmul.f32 %v869, %v915
  %v938 = vmul.f32 %v870, %v915
  %v939 = vmul.f32 %v871, %v915
  %v940 = vmul.f32 %v872, %v915
  %v941 = vmul.f32 %v873, %v915
  %v942 = vmul.f32 %v874, %v915
  %v943 = vmul.f32 %v875, %v915
  %v944 = vmul.f32 %v876, %v915
  %v945 = vmul.f32 %v877, %v915
  %v946 = vmul.f32 %v878, %v915
  %v947 = vmul.f32 %v879, %v915
  %v948 = vmul.f32 %v880, %v915
  %v949 = vmul.f32 %v881, %v915
  %v950 = vmul.f32 %v882, %v915
  %v951 = vmul.f32 %v883, %v915
  %v952 = vmul.f32 %v884, %v915
  %v953 = vmul.f32 %v885, %v915
  %v954 = vmul.f32 %v886, %v915
  %v955 = vmul.f32 %v887, %v915
  %v956 = vmul.f32 %v888, %v915
  %v957 = vmul.f32 %v889, %v915
  %v958 = vmul.f32 %v890, %v915
  %v959 = vmul.f32 %v891, %v915
  %v960 = vmul.f32 %v892, %v915
  %v961 = vmul.f32 %v893, %v915
  %v962 = vmul.f32 %v894, %v915
  %v963 = vmul.f32 %v895, %v915
  %v964 = vmul.f32 %v896, %v915
  %v965 = vmul.f32 %v897, %v915
  %v966 = vmul.f32 %v898, %v915
  %v967 = vmul.f32 %v899, %v915
  %v968 = vmul.f32 %v900, %v915
  %v969 = vmul.f32 %v901, %v915
  %v970 = vmul.f32 %v902, %v915
  %v971 = vmul.f32 %v903, %v915
  %v972 = vmul.f32 %v904, %v915
  %v973 = vmul.f32 %v905, %v915
  %v974 = vmul.f32 %v906, %v915
  %v975 = vmul.f32 %v907, %v915
  %v976 = vmul.f32 %v908, %v915
  %v977 = vmul.f32 %v909, %v915
  %v978 = vmul.f32 %v910, %v915
  %v979 = vmul.f32 %v911, %v915
  %v980 = vld [vmem:[%s4] sm:$0x1]
  %v982 = vlaneseq
  %v983 = vshrl.u32 %v982, 7
  %v984 = vsub.s32 0, %v983
  %v985 = vrot.slane %v980, %v984
  %v987 = vadd.f32 %v916, %v985
  %v988 = vadd.f32 %v917, %v985
  %v989 = vadd.f32 %v918, %v985
  %v990 = vadd.f32 %v919, %v985
  %v991 = vadd.f32 %v920, %v985
  %v992 = vadd.f32 %v921, %v985
  %v993 = vadd.f32 %v922, %v985
  %v994 = vadd.f32 %v923, %v985
  %v995 = vadd.f32 %v924, %v985
  %v996 = vadd.f32 %v925, %v985
  %v997 = vadd.f32 %v926, %v985
  %v998 = vadd.f32 %v927, %v985
  %v999 = vadd.f32 %v928, %v985
  %v1000 = vadd.f32 %v929, %v985
  %v1001 = vadd.f32 %v930, %v985
  %v1002 = vadd.f32 %v931, %v985
  %v1003 = vadd.f32 %v932, %v985
  %v1004 = vadd.f32 %v933, %v985
  %v1005 = vadd.f32 %v934, %v985
  %v1006 = vadd.f32 %v935, %v985
  %v1007 = vadd.f32 %v936, %v985
  %v1008 = vadd.f32 %v937, %v985
  %v1009 = vadd.f32 %v938, %v985
  %v1010 = vadd.f32 %v939, %v985
  %v1011 = vadd.f32 %v940, %v985
  %v1012 = vadd.f32 %v941, %v985
  %v1013 = vadd.f32 %v942, %v985
  %v1014 = vadd.f32 %v943, %v985
  %v1015 = vadd.f32 %v944, %v985
  %v1016 = vadd.f32 %v945, %v985
  %v1017 = vadd.f32 %v946, %v985
  %v1018 = vadd.f32 %v947, %v985
  %v1019 = vadd.f32 %v948, %v985
  %v1020 = vadd.f32 %v949, %v985
  %v1021 = vadd.f32 %v950, %v985
  %v1022 = vadd.f32 %v951, %v985
  %v1023 = vadd.f32 %v952, %v985
  %v1024 = vadd.f32 %v953, %v985
  %v1025 = vadd.f32 %v954, %v985
  %v1026 = vadd.f32 %v955, %v985
  %v1027 = vadd.f32 %v956, %v985
  %v1028 = vadd.f32 %v957, %v985
  %v1029 = vadd.f32 %v958, %v985
  %v1030 = vadd.f32 %v959, %v985
  %v1031 = vadd.f32 %v960, %v985
  %v1032 = vadd.f32 %v961, %v985
  %v1033 = vadd.f32 %v962, %v985
  %v1034 = vadd.f32 %v963, %v985
  %v1035 = vadd.f32 %v964, %v985
  %v1036 = vadd.f32 %v965, %v985
  %v1037 = vadd.f32 %v966, %v985
  %v1038 = vadd.f32 %v967, %v985
  %v1039 = vadd.f32 %v968, %v985
  %v1040 = vadd.f32 %v969, %v985
  %v1041 = vadd.f32 %v970, %v985
  %v1042 = vadd.f32 %v971, %v985
  %v1043 = vadd.f32 %v972, %v985
  %v1044 = vadd.f32 %v973, %v985
  %v1045 = vadd.f32 %v974, %v985
  %v1046 = vadd.f32 %v975, %v985
  %v1047 = vadd.f32 %v976, %v985
  %v1048 = vadd.f32 %v977, %v985
  %v1049 = vadd.f32 %v978, %v985
  %v1050 = vadd.f32 %v979, %v985
  %vm1051 = vcmp.ge.f32.partialorder %v987, 0.0
  %vm1052 = vcmp.ge.f32.partialorder %v988, 0.0
  %vm1053 = vcmp.ge.f32.partialorder %v989, 0.0
  %vm1054 = vcmp.ge.f32.partialorder %v990, 0.0
  %vm1055 = vcmp.ge.f32.partialorder %v991, 0.0
  %vm1056 = vcmp.ge.f32.partialorder %v992, 0.0
  %vm1057 = vcmp.ge.f32.partialorder %v993, 0.0
  %vm1058 = vcmp.ge.f32.partialorder %v994, 0.0
  %vm1059 = vcmp.ge.f32.partialorder %v995, 0.0
  %vm1060 = vcmp.ge.f32.partialorder %v996, 0.0
  %vm1061 = vcmp.ge.f32.partialorder %v997, 0.0
  %vm1062 = vcmp.ge.f32.partialorder %v998, 0.0
  %vm1063 = vcmp.ge.f32.partialorder %v999, 0.0
  %vm1064 = vcmp.ge.f32.partialorder %v1000, 0.0
  %vm1065 = vcmp.ge.f32.partialorder %v1001, 0.0
  %vm1066 = vcmp.ge.f32.partialorder %v1002, 0.0
  %vm1067 = vcmp.ge.f32.partialorder %v1003, 0.0
  %vm1068 = vcmp.ge.f32.partialorder %v1004, 0.0
  %vm1069 = vcmp.ge.f32.partialorder %v1005, 0.0
  %vm1070 = vcmp.ge.f32.partialorder %v1006, 0.0
  %vm1071 = vcmp.ge.f32.partialorder %v1007, 0.0
  %vm1072 = vcmp.ge.f32.partialorder %v1008, 0.0
  %vm1073 = vcmp.ge.f32.partialorder %v1009, 0.0
  %vm1074 = vcmp.ge.f32.partialorder %v1010, 0.0
  %vm1075 = vcmp.ge.f32.partialorder %v1011, 0.0
  %vm1076 = vcmp.ge.f32.partialorder %v1012, 0.0
  %vm1077 = vcmp.ge.f32.partialorder %v1013, 0.0
  %vm1078 = vcmp.ge.f32.partialorder %v1014, 0.0
  %vm1079 = vcmp.ge.f32.partialorder %v1015, 0.0
  %vm1080 = vcmp.ge.f32.partialorder %v1016, 0.0
  %vm1081 = vcmp.ge.f32.partialorder %v1017, 0.0
  %vm1082 = vcmp.ge.f32.partialorder %v1018, 0.0
  %vm1083 = vcmp.ge.f32.partialorder %v1019, 0.0
  %vm1084 = vcmp.ge.f32.partialorder %v1020, 0.0
  %vm1085 = vcmp.ge.f32.partialorder %v1021, 0.0
  %vm1086 = vcmp.ge.f32.partialorder %v1022, 0.0
  %vm1087 = vcmp.ge.f32.partialorder %v1023, 0.0
  %vm1088 = vcmp.ge.f32.partialorder %v1024, 0.0
  %vm1089 = vcmp.ge.f32.partialorder %v1025, 0.0
  %vm1090 = vcmp.ge.f32.partialorder %v1026, 0.0
  %vm1091 = vcmp.ge.f32.partialorder %v1027, 0.0
  %vm1092 = vcmp.ge.f32.partialorder %v1028, 0.0
  %vm1093 = vcmp.ge.f32.partialorder %v1029, 0.0
  %vm1094 = vcmp.ge.f32.partialorder %v1030, 0.0
  %vm1095 = vcmp.ge.f32.partialorder %v1031, 0.0
  %vm1096 = vcmp.ge.f32.partialorder %v1032, 0.0
  %vm1097 = vcmp.ge.f32.partialorder %v1033, 0.0
  %vm1098 = vcmp.ge.f32.partialorder %v1034, 0.0
  %vm1099 = vcmp.ge.f32.partialorder %v1035, 0.0
  %vm1100 = vcmp.ge.f32.partialorder %v1036, 0.0
  %vm1101 = vcmp.ge.f32.partialorder %v1037, 0.0
  %vm1102 = vcmp.ge.f32.partialorder %v1038, 0.0
  %vm1103 = vcmp.ge.f32.partialorder %v1039, 0.0
  %vm1104 = vcmp.ge.f32.partialorder %v1040, 0.0
  %vm1105 = vcmp.ge.f32.partialorder %v1041, 0.0
  %vm1106 = vcmp.ge.f32.partialorder %v1042, 0.0
  %vm1107 = vcmp.ge.f32.partialorder %v1043, 0.0
  %vm1108 = vcmp.ge.f32.partialorder %v1044, 0.0
  %vm1109 = vcmp.ge.f32.partialorder %v1045, 0.0
  %vm1110 = vcmp.ge.f32.partialorder %v1046, 0.0
  %vm1111 = vcmp.ge.f32.partialorder %v1047, 0.0
  %vm1112 = vcmp.ge.f32.partialorder %v1048, 0.0
  %vm1113 = vcmp.ge.f32.partialorder %v1049, 0.0
  %vm1114 = vcmp.ge.f32.partialorder %v1050, 0.0
  %v1115 = vmul.f32 %v987, 0.01
  %v1116 = vmul.f32 %v988, 0.01
  %v1117 = vmul.f32 %v989, 0.01
  %v1118 = vmul.f32 %v990, 0.01
  %v1119 = vmul.f32 %v991, 0.01
  %v1120 = vmul.f32 %v992, 0.01
  %v1121 = vmul.f32 %v993, 0.01
  %v1122 = vmul.f32 %v994, 0.01
  %v1123 = vmul.f32 %v995, 0.01
  %v1124 = vmul.f32 %v996, 0.01
  %v1125 = vmul.f32 %v997, 0.01
  %v1126 = vmul.f32 %v998, 0.01
  %v1127 = vmul.f32 %v999, 0.01
  %v1128 = vmul.f32 %v1000, 0.01
  %v1129 = vmul.f32 %v1001, 0.01
  %v1130 = vmul.f32 %v1002, 0.01
  %v1131 = vmul.f32 %v1003, 0.01
  %v1132 = vmul.f32 %v1004, 0.01
  %v1133 = vmul.f32 %v1005, 0.01
  %v1134 = vmul.f32 %v1006, 0.01
  %v1135 = vmul.f32 %v1007, 0.01
  %v1136 = vmul.f32 %v1008, 0.01
  %v1137 = vmul.f32 %v1009, 0.01
  %v1138 = vmul.f32 %v1010, 0.01
  %v1139 = vmul.f32 %v1011, 0.01
  %v1140 = vmul.f32 %v1012, 0.01
  %v1141 = vmul.f32 %v1013, 0.01
  %v1142 = vmul.f32 %v1014, 0.01
  %v1143 = vmul.f32 %v1015, 0.01
  %v1144 = vmul.f32 %v1016, 0.01
  %v1145 = vmul.f32 %v1017, 0.01
  %v1146 = vmul.f32 %v1018, 0.01
  %v1147 = vmul.f32 %v1019, 0.01
  %v1148 = vmul.f32 %v1020, 0.01
  %v1149 = vmul.f32 %v1021, 0.01
  %v1150 = vmul.f32 %v1022, 0.01
  %v1151 = vmul.f32 %v1023, 0.01
  %v1152 = vmul.f32 %v1024, 0.01
  %v1153 = vmul.f32 %v1025, 0.01
  %v1154 = vmul.f32 %v1026, 0.01
  %v1155 = vmul.f32 %v1027, 0.01
  %v1156 = vmul.f32 %v1028, 0.01
  %v1157 = vmul.f32 %v1029, 0.01
  %v1158 = vmul.f32 %v1030, 0.01
  %v1159 = vmul.f32 %v1031, 0.01
  %v1160 = vmul.f32 %v1032, 0.01
  %v1161 = vmul.f32 %v1033, 0.01
  %v1162 = vmul.f32 %v1034, 0.01
  %v1163 = vmul.f32 %v1035, 0.01
  %v1164 = vmul.f32 %v1036, 0.01
  %v1165 = vmul.f32 %v1037, 0.01
  %v1166 = vmul.f32 %v1038, 0.01
  %v1167 = vmul.f32 %v1039, 0.01
  %v1168 = vmul.f32 %v1040, 0.01
  %v1169 = vmul.f32 %v1041, 0.01
  %v1170 = vmul.f32 %v1042, 0.01
  %v1171 = vmul.f32 %v1043, 0.01
  %v1172 = vmul.f32 %v1044, 0.01
  %v1173 = vmul.f32 %v1045, 0.01
  %v1174 = vmul.f32 %v1046, 0.01
  %v1175 = vmul.f32 %v1047, 0.01
  %v1176 = vmul.f32 %v1048, 0.01
  %v1177 = vmul.f32 %v1049, 0.01
  %v1178 = vmul.f32 %v1050, 0.01
  %v1179 = vsel %vm1051, %v987, %v1115
  %v1180 = vsel %vm1052, %v988, %v1116
  %v1181 = vsel %vm1053, %v989, %v1117
  %v1182 = vsel %vm1054, %v990, %v1118
  %v1183 = vsel %vm1055, %v991, %v1119
  %v1184 = vsel %vm1056, %v992, %v1120
  %v1185 = vsel %vm1057, %v993, %v1121
  %v1186 = vsel %vm1058, %v994, %v1122
  %v1187 = vsel %vm1059, %v995, %v1123
  %v1188 = vsel %vm1060, %v996, %v1124
  %v1189 = vsel %vm1061, %v997, %v1125
  %v1190 = vsel %vm1062, %v998, %v1126
  %v1191 = vsel %vm1063, %v999, %v1127
  %v1192 = vsel %vm1064, %v1000, %v1128
  %v1193 = vsel %vm1065, %v1001, %v1129
  %v1194 = vsel %vm1066, %v1002, %v1130
  %v1195 = vsel %vm1067, %v1003, %v1131
  %v1196 = vsel %vm1068, %v1004, %v1132
  %v1197 = vsel %vm1069, %v1005, %v1133
  %v1198 = vsel %vm1070, %v1006, %v1134
  %v1199 = vsel %vm1071, %v1007, %v1135
  %v1200 = vsel %vm1072, %v1008, %v1136
  %v1201 = vsel %vm1073, %v1009, %v1137
  %v1202 = vsel %vm1074, %v1010, %v1138
  %v1203 = vsel %vm1075, %v1011, %v1139
  %v1204 = vsel %vm1076, %v1012, %v1140
  %v1205 = vsel %vm1077, %v1013, %v1141
  %v1206 = vsel %vm1078, %v1014, %v1142
  %v1207 = vsel %vm1079, %v1015, %v1143
  %v1208 = vsel %vm1080, %v1016, %v1144
  %v1209 = vsel %vm1081, %v1017, %v1145
  %v1210 = vsel %vm1082, %v1018, %v1146
  %v1211 = vsel %vm1083, %v1019, %v1147
  %v1212 = vsel %vm1084, %v1020, %v1148
  %v1213 = vsel %vm1085, %v1021, %v1149
  %v1214 = vsel %vm1086, %v1022, %v1150
  %v1215 = vsel %vm1087, %v1023, %v1151
  %v1216 = vsel %vm1088, %v1024, %v1152
  %v1217 = vsel %vm1089, %v1025, %v1153
  %v1218 = vsel %vm1090, %v1026, %v1154
  %v1219 = vsel %vm1091, %v1027, %v1155
  %v1220 = vsel %vm1092, %v1028, %v1156
  %v1221 = vsel %vm1093, %v1029, %v1157
  %v1222 = vsel %vm1094, %v1030, %v1158
  %v1223 = vsel %vm1095, %v1031, %v1159
  %v1224 = vsel %vm1096, %v1032, %v1160
  %v1225 = vsel %vm1097, %v1033, %v1161
  %v1226 = vsel %vm1098, %v1034, %v1162
  %v1227 = vsel %vm1099, %v1035, %v1163
  %v1228 = vsel %vm1100, %v1036, %v1164
  %v1229 = vsel %vm1101, %v1037, %v1165
  %v1230 = vsel %vm1102, %v1038, %v1166
  %v1231 = vsel %vm1103, %v1039, %v1167
  %v1232 = vsel %vm1104, %v1040, %v1168
  %v1233 = vsel %vm1105, %v1041, %v1169
  %v1234 = vsel %vm1106, %v1042, %v1170
  %v1235 = vsel %vm1107, %v1043, %v1171
  %v1236 = vsel %vm1108, %v1044, %v1172
  %v1237 = vsel %vm1109, %v1045, %v1173
  %v1238 = vsel %vm1110, %v1046, %v1174
  %v1239 = vsel %vm1111, %v1047, %v1175
  %v1240 = vsel %vm1112, %v1048, %v1176
  %v1241 = vsel %vm1113, %v1049, %v1177
  %v1242 = vsel %vm1114, %v1050, %v1178
  %1243 = vst [vmem:[%s5] sm:$0xff] %v1179
  %1244 = vst [vmem:[%s5 + $0x8] sm:$0xff] %v1180
  %1245 = vst [vmem:[%s5 + $0x10] sm:$0xff] %v1181
  %1246 = vst [vmem:[%s5 + $0x18] sm:$0xff] %v1182
  %1247 = vst [vmem:[%s5 + $0x20] sm:$0xff] %v1183
  %1248 = vst [vmem:[%s5 + $0x28] sm:$0xff] %v1184
  %1249 = vst [vmem:[%s5 + $0x30] sm:$0xff] %v1185
  %1250 = vst [vmem:[%s5 + $0x38] sm:$0xff] %v1186
  %1251 = vst [vmem:[%s5 + $0x40] sm:$0xff] %v1187
  %1252 = vst [vmem:[%s5 + $0x48] sm:$0xff] %v1188
  %1253 = vst [vmem:[%s5 + $0x50] sm:$0xff] %v1189
  %1254 = vst [vmem:[%s5 + $0x58] sm:$0xff] %v1190
  %1255 = vst [vmem:[%s5 + $0x60] sm:$0xff] %v1191
  %1256 = vst [vmem:[%s5 + $0x68] sm:$0xff] %v1192
  %1257 = vst [vmem:[%s5 + $0x70] sm:$0xff] %v1193
  %1258 = vst [vmem:[%s5 + $0x78] sm:$0xff] %v1194
  %1259 = vst [vmem:[%s5 + $0x80] sm:$0xff] %v1195
  %1260 = vst [vmem:[%s5 + $0x88] sm:$0xff] %v1196
  %1261 = vst [vmem:[%s5 + $0x90] sm:$0xff] %v1197
  %1262 = vst [vmem:[%s5 + $0x98] sm:$0xff] %v1198
  %1263 = vst [vmem:[%s5 + $0xa0] sm:$0xff] %v1199
  %1264 = vst [vmem:[%s5 + $0xa8] sm:$0xff] %v1200
  %1265 = vst [vmem:[%s5 + $0xb0] sm:$0xff] %v1201
  %1266 = vst [vmem:[%s5 + $0xb8] sm:$0xff] %v1202
  %1267 = vst [vmem:[%s5 + $0xc0] sm:$0xff] %v1203
  %1268 = vst [vmem:[%s5 + $0xc8] sm:$0xff] %v1204
  %1269 = vst [vmem:[%s5 + $0xd0] sm:$0xff] %v1205
  %1270 = vst [vmem:[%s5 + $0xd8] sm:$0xff] %v1206
  %1271 = vst [vmem:[%s5 + $0xe0] sm:$0xff] %v1207
  %1272 = vst [vmem:[%s5 + $0xe8] sm:$0xff] %v1208
  %1273 = vst [vmem:[%s5 + $0xf0] sm:$0xff] %v1209
  %1274 = vst [vmem:[%s5 + $0xf8] sm:$0xff] %v1210
  %1275 = vst [vmem:[%s5 + $0x100] sm:$0xff] %v1211
  %1276 = vst [vmem:[%s5 + $0x108] sm:$0xff] %v1212
  %1277 = vst [vmem:[%s5 + $0x110] sm:$0xff] %v1213
  %1278 = vst [vmem:[%s5 + $0x118] sm:$0xff] %v1214
  %1279 = vst [vmem:[%s5 + $0x120] sm:$0xff] %v1215
  %1280 = vst [vmem:[%s5 + $0x128] sm:$0xff] %v1216
  %1281 = vst [vmem:[%s5 + $0x130] sm:$0xff] %v1217
  %1282 = vst [vmem:[%s5 + $0x138] sm:$0xff] %v1218
  %1283 = vst [vmem:[%s5 + $0x140] sm:$0xff] %v1219
  %1284 = vst [vmem:[%s5 + $0x148] sm:$0xff] %v1220
  %1285 = vst [vmem:[%s5 + $0x150] sm:$0xff] %v1221
  %1286 = vst [vmem:[%s5 + $0x158] sm:$0xff] %v1222
  %1287 = vst [vmem:[%s5 + $0x160] sm:$0xff] %v1223
  %1288 = vst [vmem:[%s5 + $0x168] sm:$0xff] %v1224
  %1289 = vst [vmem:[%s5 + $0x170] sm:$0xff] %v1225
  %1290 = vst [vmem:[%s5 + $0x178] sm:$0xff] %v1226
  %1291 = vst [vmem:[%s5 + $0x180] sm:$0xff] %v1227
  %1292 = vst [vmem:[%s5 + $0x188] sm:$0xff] %v1228
  %1293 = vst [vmem:[%s5 + $0x190] sm:$0xff] %v1229
  %1294 = vst [vmem:[%s5 + $0x198] sm:$0xff] %v1230
  %1295 = vst [vmem:[%s5 + $0x1a0] sm:$0xff] %v1231
  %1296 = vst [vmem:[%s5 + $0x1a8] sm:$0xff] %v1232
  %1297 = vst [vmem:[%s5 + $0x1b0] sm:$0xff] %v1233
  %1298 = vst [vmem:[%s5 + $0x1b8] sm:$0xff] %v1234
  %1299 = vst [vmem:[%s5 + $0x1c0] sm:$0xff] %v1235
  %1300 = vst [vmem:[%s5 + $0x1c8] sm:$0xff] %v1236
  %1301 = vst [vmem:[%s5 + $0x1d0] sm:$0xff] %v1237
  %1302 = vst [vmem:[%s5 + $0x1d8] sm:$0xff] %v1238
  %1303 = vst [vmem:[%s5 + $0x1e0] sm:$0xff] %v1239
  %1304 = vst [vmem:[%s5 + $0x1e8] sm:$0xff] %v1240
  %1305 = vst [vmem:[%s5 + $0x1f0] sm:$0xff] %v1241
  %1306 = vst [vmem:[%s5 + $0x1f8] sm:$0xff] %v1242
  // Predicated region
  $region22: #{conv2d_module_forward.1} parent=0 // pred_check
    _
  $region23: #{conv2d_module_forward.1} parent=0 // pred_check_branch
    %1308 = sbr.rel (0) target = $region25
  $region24: #{conv2d_module_forward.1} parent=0 // pred_region
    _
  $region25: #{conv2d_module_forward.1} parent=0 // pred_fallthru
    _
  // Predicated region
  $region26: #{conv2d_module_forward.1} parent=0 // pred_check
    _
  $region27: #{conv2d_module_forward.1} parent=0 // pred_check_branch
    %1310 = sbr.rel (0) target = $region29
  $region28: #{conv2d_module_forward.1} parent=0 // pred_region
    _
  $region29: #{conv2d_module_forward.1} parent=0 // pred_fallthru
    _

</llo_original>
